<compile_context>
chip_gen: v7x
topology: tpu7x:2x2x1
jax: 0.10.0
libtpu: 0.0.40
codegen_flags: <defaults>
</compile_context>

<pallas_src>
import functools

import jax
import jax.numpy as jnp
import numpy as np
from jax.experimental import pallas as pl
from jax.experimental.pallas import tpu as pltpu


def _round_up(n, m):
    return ((n + m - 1) // m) * m


def classifier_kernel(x_ref, w12_ref, b12_ref, w3_ref, o_ref, f_ref, *,
                      sigmoid_bf16):
    """One (batch-tile, class-tile) grid step.

    x_ref   : [TB, Din_p]     bf16  (resident across the inner class axis)
    w12_ref : [Din_p, 2*Dh_p] bf16  (VMEM-resident, single-buffered)
    b12_ref : [1, 2*Dh_p]     f32   (VMEM-resident, single-buffered)
    w3_ref  : [Dh_p, TCn]     bf16  (streamed over class tiles)
    o_ref   : [TB, TCn]
    f_ref   : [TB, Dh_p]      bf16 scratch: gated-tanh activation of this batch tile
    """
    # Compute the gated-tanh activation once per batch tile (class axis is the
    # inner "arbitrary" grid dim) and reuse it for every class tile.
    @pl.when(pl.program_id(1) == 0)
    def _():
        dh = w3_ref.shape[0]                         # padded hidden width (x128)
        h = jnp.dot(x_ref[...], w12_ref[...],
                    preferred_element_type=jnp.float32) + b12_ref[...]
        y_tilde = jnp.tanh(h[:, :dh])                # EUP tanh      (f32)
        g = jax.nn.sigmoid(h[:, dh:])                # EUP logistic  (f32)
        f_ref[...] = (y_tilde * g).astype(f_ref.dtype)

    logits = jnp.dot(f_ref[...], w3_ref[...], preferred_element_type=jnp.float32)
    if sigmoid_bf16:
        # Probability output: bf16 EUP sigmoid is ~2x f32 on v6e/v7x.
        logits = logits.astype(jnp.bfloat16)
    o_ref[...] = jax.nn.sigmoid(logits).astype(o_ref.dtype)


def prepare_classifier_params(w1, b1, w2, b2, w3, *,
                              weight_dtype=jnp.bfloat16, class_tile=512):
    """One-time prep (model init): transpose to [in, out], pad to lane multiples,
    fuse W1|W2 and b1|b2, cast weights to bf16, and pick the class-tile width.
    Handles non-square NonLinear weights (Din != Dh)."""
    w1 = jnp.asarray(w1, jnp.float32)
    w2 = jnp.asarray(w2, jnp.float32)
    w3 = jnp.asarray(w3, jnp.float32)
    b1 = jnp.asarray(b1, jnp.float32)
    b2 = jnp.asarray(b2, jnp.float32)

    Dh, Din = w1.shape                     # PyTorch Linear weight is [out, in]
    assert w2.shape == (Dh, Din), "W1/W2 must share [out, in] shapes"
    C, Dh3 = w3.shape
    assert Dh3 == Dh and b1.shape == (Dh,) and b2.shape == (Dh,)

    Din_p = _round_up(Din, 128)
    Dh_p = _round_up(Dh, 128)
    # Class tile: lane multiple, capped at class_tile; Cp = whole number of tiles.
    TCn = min(_round_up(C, 128), _round_up(class_tile, 128))
    Cp = _round_up(C, TCn)

    def pad2(a, rows, cols):
        return jnp.pad(a, ((0, rows - a.shape[0]), (0, cols - a.shape[1])))

    w12 = jnp.concatenate([pad2(w1.T, Din_p, Dh_p),
                           pad2(w2.T, Din_p, Dh_p)], axis=1).astype(weight_dtype)
    b12 = jnp.concatenate([jnp.pad(b1, (0, Dh_p - Dh)),
                           jnp.pad(b2, (0, Dh_p - Dh))]).reshape(1, 2 * Dh_p)
    w3t = pad2(w3.T, Dh_p, Cp).astype(weight_dtype)

    return dict(w12=w12, b12=b12, w3t=w3t,
                Din=Din, Dh=Dh, C=C, Din_p=Din_p, Dh_p=Dh_p, Cp=Cp, TCn=TCn)


def _device_vmem_bytes():
    try:
        return int(pltpu.get_tpu_info().vmem_capacity_bytes)
    except Exception:
        return 64 << 20        # conservative fallback: v7x per-TensorCore VMEM


def classifier_forward(x, params, *, batch_tile=256, out_dtype=jnp.float32,
                       sigmoid_bf16=True):
    """x: [B, Din] float. Returns sigmoid(Classifier(x)) as [B, C] `out_dtype`.

    batch_tile  : cap on rows per grid step (~128 on v5e, 256+ on v6e/v7x).
    out_dtype   : jnp.bfloat16 halves output HBM traffic if downstream allows it.
    sigmoid_bf16: run the wide final sigmoid on bf16 logits (set False on v5e).
    """
    B, Din = x.shape
    assert Din == params["Din"]
    Din_p, Dh_p, Cp, TCn, C = (params["Din_p"], params["Dh_p"], params["Cp"],
                               params["TCn"], params["C"])
    w12, b12, w3t = params["w12"], params["b12"], params["w3t"]

    # Batch tile: multiple of 16 sublanes (bf16 x tile), capped at batch_tile.
    B16 = _round_up(B, 16)
    TB = min(_round_up(batch_tile, 16), B16)
    # Prefer >=2 batch tiles so the "parallel" batch axis can span v7x's 2 TCs.
    if TB == B16 and B16 >= 32:
        TB = _round_up(B16 // 2, 16)
    Bp = _round_up(B, TB)

    # Pad + cast x to bf16 once in the wrapper (halves x DMA and its VMEM tiles).
    x_p = jnp.pad(x.astype(jnp.bfloat16), ((0, Bp - B), (0, Din_p - Din)))

    n_batch_tiles = Bp // TB
    n_class_tiles = Cp // TCn
    wbytes = w12.dtype.itemsize
    obytes = jnp.dtype(out_dtype).itemsize

    # VMEM accounting: single-buffered resident weights, streamed W3 tiles,
    # double-buffered bf16 x / out tiles, bf16 f scratch, and the f32
    # intermediates (h[TB, 2*Dh_p], logits[TB, TCn]) Mosaic materializes in VMEM.
    w3_bufs = 1 if n_class_tiles == 1 else 2
    est = (w12.size * wbytes                    # W1|W2   (Buffered(1))
           + b12.size * 4                       # b1|b2   (Buffered(1), f32)
           + w3_bufs * Dh_p * TCn * wbytes      # W3 tile(s)
           + 2 * TB * Din_p * 2                 # x tiles (bf16, double-buffered)
           + 2 * TB * TCn * obytes              # out tiles (double-buffered)
           + TB * Dh_p * 2                      # f scratch (bf16)
           + TB * 2 * Dh_p * 4                  # h intermediate (f32)
           + TB * TCn * 4)                      # logits intermediate (f32)
    vmem_cap = _device_vmem_bytes()
    vmem_limit = int(min(0.9 * vmem_cap, max(32 << 20, 1.3 * est)))

    kernel = functools.partial(classifier_kernel, sigmoid_bf16=sigmoid_bf16)
    resident = pl.Buffered(1)   # constant index_map -> no second pipeline buffer
    w3_pm = {"pipeline_mode": pl.Buffered(1)} if n_class_tiles == 1 else {}

    out = pl.pallas_call(
        kernel,
        out_shape=jax.ShapeDtypeStruct((Bp, Cp), out_dtype),
        grid=(n_batch_tiles, n_class_tiles),
        in_specs=[
            pl.BlockSpec((TB, Din_p), lambda i, j: (i, 0)),        # x tile
            pl.BlockSpec((Din_p, 2 * Dh_p), lambda i, j: (0, 0),
                         pipeline_mode=resident),                  # W1|W2
            pl.BlockSpec((1, 2 * Dh_p), lambda i, j: (0, 0),
                         pipeline_mode=resident),                  # b1|b2
            pl.BlockSpec((Dh_p, TCn), lambda i, j: (0, j), **w3_pm),  # W3 tile
        ],
        out_specs=pl.BlockSpec((TB, TCn), lambda i, j: (i, j)),
        scratch_shapes=[pltpu.VMEM((TB, Dh_p), jnp.bfloat16)],     # f(x) per batch tile
        compiler_params=pltpu.CompilerParams(
            dimension_semantics=("parallel", "arbitrary"),
            vmem_limit_bytes=vmem_limit,
        ),
    )(x_p, w12, b12, w3t)

    return out[:B, :C]


def reference_forward(x, w1, b1, w2, b2, w3, *, weight_dtype=jnp.bfloat16,
                      sigmoid_bf16=True):
    # Mirrors the kernel's numerics: bf16 operand quantization for the matmuls,
    # f32 accumulation, f32 bias add and gate activations.
    q = lambda a: jnp.asarray(a, jnp.float32).astype(weight_dtype).astype(jnp.float32)
    xq = q(x)
    y_tilde = jnp.tanh(xq @ q(w1).T + b1)
    g = jax.nn.sigmoid(xq @ q(w2).T + b2)
    f = q(y_tilde * g)
    logits = f @ q(w3).T
    if sigmoid_bf16:
        logits = logits.astype(jnp.bfloat16)
    return jax.nn.sigmoid(logits).astype(jnp.float32)


if __name__ == "__main__":
    B, D, C = 8, 32, 16   # batch, input_size, num_classes (small test shapes)
    key = jax.random.PRNGKey(0)
    kx, k1, kb1, k2, kb2, k3 = jax.random.split(key, 6)

    x = jax.random.normal(kx, (B, D), dtype=jnp.float32)
    # PyTorch-shaped parameters: Linear weights are [out, in].
    w1 = jax.random.normal(k1, (D, D), dtype=jnp.float32) * 0.1
    b1 = jax.random.normal(kb1, (D,), dtype=jnp.float32) * 0.1
    w2 = jax.random.normal(k2, (D, D), dtype=jnp.float32) * 0.1
    b2 = jax.random.normal(kb2, (D,), dtype=jnp.float32) * 0.1
    w3 = jax.random.normal(k3, (C, D), dtype=jnp.float32) * 0.1

    params = prepare_classifier_params(w1, b1, w2, b2, w3)
    out = jax.block_until_ready(classifier_forward(x, params))

    ref = jax.block_until_ready(reference_forward(x, w1, b1, w2, b2, w3))
    np.testing.assert_allclose(np.asarray(out), np.asarray(ref),
                               rtol=5e-3, atol=5e-3)
    assert out.shape == (B, C)
    print("KERNEL_OK")
</pallas_src>

<mosaic_0001>
module attributes {stable_mosaic.version = 11 : i64} {
  func.func @classifier_kernel(%arg0: i32, %arg1: i32, %arg2: memref<16x128xbf16, #tpu.memory_space<vmem>>, %arg3: memref<128x256xbf16, #tpu.memory_space<vmem>>, %arg4: memref<1x256xf32, #tpu.memory_space<vmem>>, %arg5: memref<128x128xbf16, #tpu.memory_space<vmem>>, %arg6: memref<16x128xf32, #tpu.memory_space<vmem>>, %arg7: memref<16x128xbf16, #tpu.memory_space<vmem>>) attributes {dimension_semantics = [#tpu.dimension_semantics<parallel>, #tpu.dimension_semantics<arbitrary>], iteration_bounds = array<i64: 1, 1>, scalar_prefetch = 0 : i64, scratch_operands = 1 : i64, tpu.core_type = #tpu.core_type<tc>, window_params = [{transform_indices = @transform_0, window_bounds = array<i64: 16, 128>}, {pipeline_mode = #tpu.pipeline_mode<synchronous>, transform_indices = @transform_1, window_bounds = array<i64: 128, 256>}, {pipeline_mode = #tpu.pipeline_mode<synchronous>, transform_indices = @transform_2, window_bounds = array<i64: 1, 256>}, {pipeline_mode = #tpu.pipeline_mode<synchronous>, transform_indices = @transform_3, window_bounds = array<i64: 128, 128>}, {transform_indices = @transform_4, window_bounds = array<i64: 16, 128>}]} {
    %c0_i32 = arith.constant 0 : i32
    %0 = arith.cmpi eq, %arg1, %c0_i32 : i32
    %1 = arith.extui %0 : i1 to i32
    %c0_i32_0 = arith.constant 0 : i32
    %2 = arith.cmpi ne, %1, %c0_i32_0 : i32
    scf.if %2 {
      %c0_7 = arith.constant 0 : index
      %c0_8 = arith.constant 0 : index
      %14 = vector.load %arg2[%c0_7, %c0_8] : memref<16x128xbf16, #tpu.memory_space<vmem>>, vector<16x128xbf16>
      %c0_9 = arith.constant 0 : index
      %c0_10 = arith.constant 0 : index
      %15 = vector.load %arg3[%c0_9, %c0_10] : memref<128x256xbf16, #tpu.memory_space<vmem>>, vector<128x256xbf16>
      %cst_11 = arith.constant dense<0.000000e+00> : vector<16x256xf32>
      %16 = tpu.matmul %14, %15, %cst_11 {dimension_numbers = #tpu.dot_dimension_numbers<[1], [0], [0], [1], [0, 0, 1, 1], [], []>} : vector<16x128xbf16>, vector<128x256xbf16>, vector<16x256xf32> -> vector<16x256xf32>
      %c0_12 = arith.constant 0 : index
      %c0_13 = arith.constant 0 : index
      %17 = vector.load %arg4[%c0_12, %c0_13] : memref<1x256xf32, #tpu.memory_space<vmem>>, vector<1x256xf32>
      %18 = vector.broadcast %17 : vector<1x256xf32> to vector<16x256xf32>
      %19 = arith.addf %16, %18 : vector<16x256xf32>
      %20 = vector.extract_strided_slice %19 {offsets = [0, 0], sizes = [16, 128], strides = [1, 1]} : vector<16x256xf32> to vector<16x128xf32>
      %21 = math.tanh %20 : vector<16x128xf32>
      %22 = vector.extract_strided_slice %19 {offsets = [0, 128], sizes = [16, 128], strides = [1, 1]} : vector<16x256xf32> to vector<16x128xf32>
      %23 = arith.negf %22 : vector<16x128xf32>
      %24 = math.exp %23 : vector<16x128xf32>
      %cst_14 = arith.constant 1.000000e+00 : f32
      %25 = vector.broadcast %cst_14 : f32 to vector<16x128xf32>
      %26 = arith.addf %25, %24 : vector<16x128xf32>
      %27 = arith.divf %25, %26 : vector<16x128xf32>
      %28 = arith.mulf %21, %27 : vector<16x128xf32>
      %29 = arith.truncf %28 : vector<16x128xf32> to vector<16x128xbf16>
      %c0_15 = arith.constant 0 : index
      %c0_16 = arith.constant 0 : index
      %30 = vector.load %arg7[%c0_15, %c0_16] : memref<16x128xbf16, #tpu.memory_space<vmem>>, vector<16x128xbf16>
      tpu.vector_store %arg7[%c0_15, %c0_16], %29 {strides = array<i32>} : memref<16x128xbf16, #tpu.memory_space<vmem>>, vector<16x128xbf16>,
    } else {
    }
    %c0 = arith.constant 0 : index
    %c0_1 = arith.constant 0 : index
    %3 = vector.load %arg7[%c0, %c0_1] : memref<16x128xbf16, #tpu.memory_space<vmem>>, vector<16x128xbf16>
    %c0_2 = arith.constant 0 : index
    %c0_3 = arith.constant 0 : index
    %4 = vector.load %arg5[%c0_2, %c0_3] : memref<128x128xbf16, #tpu.memory_space<vmem>>, vector<128x128xbf16>
    %cst = arith.constant dense<0.000000e+00> : vector<16x128xf32>
    %5 = tpu.matmul %3, %4, %cst {dimension_numbers = #tpu.dot_dimension_numbers<[1], [0], [0], [1], [0, 0, 1, 1], [], []>} : vector<16x128xbf16>, vector<128x128xbf16>, vector<16x128xf32> -> vector<16x128xf32>
    %6 = arith.truncf %5 : vector<16x128xf32> to vector<16x128xbf16>
    %7 = arith.negf %6 : vector<16x128xbf16>
    %8 = math.exp %7 : vector<16x128xbf16>
    %cst_4 = arith.constant 1.000000e+00 : bf16
    %9 = vector.broadcast %cst_4 : bf16 to vector<16x128xbf16>
    %10 = arith.addf %9, %8 : vector<16x128xbf16>
    %11 = arith.divf %9, %10 : vector<16x128xbf16>
    %12 = arith.extf %11 : vector<16x128xbf16> to vector<16x128xf32>
    %c0_5 = arith.constant 0 : index
    %c0_6 = arith.constant 0 : index
    %13 = vector.load %arg6[%c0_5, %c0_6] : memref<16x128xf32, #tpu.memory_space<vmem>>, vector<16x128xf32>
    tpu.vector_store %arg6[%c0_5, %c0_6], %12 {strides = array<i32>} : memref<16x128xf32, #tpu.memory_space<vmem>>, vector<16x128xf32>,
    return
  }
  func.func @transform_0(%arg0: i32, %arg1: i32) -> (i32, i32) {
    %c0_i32 = arith.constant 0 : i32
    %c0_i32_0 = arith.constant 0 : i32
    return %arg0, %c0_i32 : i32, i32
  }
  func.func @transform_1(%arg0: i32, %arg1: i32) -> (i32, i32) {
    %c0_i32 = arith.constant 0 : i32
    %c0_i32_0 = arith.constant 0 : i32
    %c0_i32_1 = arith.constant 0 : i32
    return %c0_i32, %c0_i32_0 : i32, i32
  }
  func.func @transform_2(%arg0: i32, %arg1: i32) -> (i32, i32) {
    %c0_i32 = arith.constant 0 : i32
    %c0_i32_0 = arith.constant 0 : i32
    %c0_i32_1 = arith.constant 0 : i32
    return %c0_i32, %c0_i32_0 : i32, i32
  }
  func.func @transform_3(%arg0: i32, %arg1: i32) -> (i32, i32) {
    %c0_i32 = arith.constant 0 : i32
    %c0_i32_0 = arith.constant 0 : i32
    return %c0_i32, %arg1 : i32, i32
  }
  func.func @transform_4(%arg0: i32, %arg1: i32) -> (i32, i32) {
    %c0_i32 = arith.constant 0 : i32
    return %arg0, %arg1 : i32, i32
  }
}

</mosaic_0001>

<llo_original>
// kernel: tpu_custom_call.1
$region0: #{tpu_custom_call.1}
  #allocation0 [shape = 'u32[]', space=smem, size = 0x4, offset = 0x4, fixed_abs, tag = 'smem constant byte address 0x4 - core index']
  #allocation1 [shape = 'u32[144,128]{1,0:T(1,128)}', space=vmem, size = 0x12000, scoped, tag = 'internal scratch']
  #allocation2 [shape = 'bf16[16,128]{1,0:T(16,128)(2,1)}', space=vmem, size = 0x1000, scoped, tag = 'scratch operand']
  %s0 = inlined_call_operand.hbm [shape: bf16[16,128], index: 0, kind: input, shape index: {}]
  %s1 = inlined_call_operand.hbm [shape: bf16[128,256], index: 1, kind: input, shape index: {}]
  %s2 = inlined_call_operand.vmem [shape: f32[1,256], index: 2, kind: input, shape index: {}]
  %s3 = inlined_call_operand.hbm [shape: bf16[128,128], index: 3, kind: input, shape index: {}]
  %s4 = inlined_call_operand.hbm [shape: f32[16,128], index: 4, kind: output, shape index: {}]
  %s5 = sld [smem:[#allocation0]]
  $region42: #{tpu_custom_call.1} parent=0
    _
  %s7 = ssub.s32 1, %s5
  %s8 = scalar_select 0, %s7, %s5
  $region1: #{tpu_custom_call.1} parent=0
    #allocation3 [shape = 'u8[4096]{0}', space=vmem, size = 0x1000, scoped, tag = 'input window, operand 0, single buffered']
    #allocation4 [shape = 's32[1]{0}', space=sflag, size = 0x4, scoped, tag = 'scoped memory for tpu_custom_call.1']
    #allocation5 [shape = 's32[1]{0}', space=sflag, size = 0x4, scoped, tag = 'scoped memory for tpu_custom_call.1']
    #allocation6 [shape = 'u8[65536]{0}', space=vmem, size = 0x10000, scoped, tag = 'input window, operand 1, single buffered']
    #allocation7 [shape = 's32[1]{0}', space=sflag, size = 0x4, scoped, tag = 'scoped memory for tpu_custom_call.1']
    #allocation8 [shape = 'u8[32768]{0}', space=vmem, size = 0x8000, scoped, tag = 'input window, operand 3, single buffered']
    #allocation9 [shape = 'u8[8192]{0}', space=vmem, size = 0x2000, scoped, tag = 'output window, operand 0, single buffered']
    %9 = vsyncpa [#allocation4], 0
    %10 = vsyncpa [#allocation7], 0
    %11 = vsyncpa [#allocation5], 0
    // Predicated region
    $region2: #{tpu_custom_call.1} parent=1 // pred_check
      _
    $region3: #{tpu_custom_call.1} parent=1 // pred_check_branch
      %13 = sbr.rel (0) target = $region5
    $region4: #{tpu_custom_call.1} parent=1 // pred_region
      %s15 = ssub.s32 128, 128
      %16 = vsyncadd [#allocation4], %s15
      %s17 = sshll.u32 [#allocation3], 4
      %s18 = int_to_ptr.vmem [resolvable:$true] %s17
      %23 = dma.hbm_to_vmem [thread:$0]  %s0, 128, %s18, [#allocation4], 64, 64, 4
    $region5: #{tpu_custom_call.1} parent=1 // pred_fallthru
      _
    // Predicated region
    $region6: #{tpu_custom_call.1} parent=1 // pred_check
      _
    $region7: #{tpu_custom_call.1} parent=1 // pred_check_branch
      %25 = sbr.rel (0) target = $region9
    $region8: #{tpu_custom_call.1} parent=1 // pred_region
      %s27 = ssub.s32 2048, 2048
      %28 = vsyncadd [#allocation7], %s27
      %s29 = sshll.u32 [#allocation6], 4
      %s30 = int_to_ptr.vmem [resolvable:$true] %s29
      %35 = dma.hbm_to_vmem [thread:$0]  %s1, 2048, %s30, [#allocation7], 128, 128, 8
    $region9: #{tpu_custom_call.1} parent=1 // pred_fallthru
      _
    // Predicated region
    $region10: #{tpu_custom_call.1} parent=1 // pred_check
      _
    $region11: #{tpu_custom_call.1} parent=1 // pred_check_branch
      %37 = sbr.rel (0) target = $region13
    $region12: #{tpu_custom_call.1} parent=1 // pred_region
      _
    $region13: #{tpu_custom_call.1} parent=1 // pred_fallthru
      _
    // Predicated region
    $region14: #{tpu_custom_call.1} parent=1 // pred_check
      _
    $region15: #{tpu_custom_call.1} parent=1 // pred_check_branch
      %39 = sbr.rel (0) target = $region17
    $region16: #{tpu_custom_call.1} parent=1 // pred_region
      %s41 = ssub.s32 1024, 1024
      %42 = vsyncadd [#allocation7], %s41
      %s43 = sshll.u32 [#allocation8], 4
      %s44 = int_to_ptr.vmem [resolvable:$true] %s43
      %49 = dma.hbm_to_vmem [thread:$0]  %s3, 1024, %s44, [#allocation7], 64, 64, 4
    $region17: #{tpu_custom_call.1} parent=1 // pred_fallthru
      _
    // Predicated region
    $region18: #{tpu_custom_call.1} parent=1 // pred_check
      _
    $region19: #{tpu_custom_call.1} parent=1 // pred_check_branch
      %51 = sbr.rel (0) target = $region21
    $region20: #{tpu_custom_call.1} parent=1 // pred_region
      %52 = dma.done [#allocation4], 128
    $region21: #{tpu_custom_call.1} parent=1 // pred_fallthru
      _
    // Predicated region
    $region22: #{tpu_custom_call.1} parent=1 // pred_check
      _
    $region23: #{tpu_custom_call.1} parent=1 // pred_check_branch
      %54 = sbr.rel (0) target = $region25
    $region24: #{tpu_custom_call.1} parent=1 // pred_region
      %55 = dma.done [#allocation7], 2048
    $region25: #{tpu_custom_call.1} parent=1 // pred_fallthru
      _
    // Predicated region
    $region26: #{tpu_custom_call.1} parent=1 // pred_check
      _
    $region27: #{tpu_custom_call.1} parent=1 // pred_check_branch
      %57 = sbr.rel (0) target = $region29
    $region28: #{tpu_custom_call.1} parent=1 // pred_region
      %58 = dma.done [#allocation7], 1024
    $region29: #{tpu_custom_call.1} parent=1 // pred_fallthru
      _
    %p61 = scmp.eq.s32.totalorder 0, 0
    // Predicated region
    $region30: #{tpu_custom_call.1} parent=1 // pred_check
      %p62 = pneg %p61
    $region31: #{tpu_custom_call.1} parent=1 // pred_check_branch
      %64 = sbr.rel (%p62) target = $region33
    $region32: #{tpu_custom_call.1} parent=1 // pred_region
      %v65 = vld [vmem:[#allocation3] sm:$0xf]
      %v66 = vld [vmem:[#allocation3 + $0x4] sm:$0xf]
      %v67 = vld [vmem:[#allocation6] sm:$0xff]
      %v68 = vld [vmem:[#allocation6 + $0x8] sm:$0xff]
      %v69 = vld [vmem:[#allocation6 + $0x10] sm:$0xff]
      %v70 = vld [vmem:[#allocation6 + $0x18] sm:$0xff]
      %v71 = vld [vmem:[#allocation6 + $0x20] sm:$0xff]
      %v72 = vld [vmem:[#allocation6 + $0x28] sm:$0xff]
      %v73 = vld [vmem:[#allocation6 + $0x30] sm:$0xff]
      %v74 = vld [vmem:[#allocation6 + $0x38] sm:$0xff]
      %v75 = vld [vmem:[#allocation6 + $0x40] sm:$0xff]
      %v76 = vld [vmem:[#allocation6 + $0x48] sm:$0xff]
      %v77 = vld [vmem:[#allocation6 + $0x50] sm:$0xff]
      %v78 = vld [vmem:[#allocation6 + $0x58] sm:$0xff]
      %v79 = vld [vmem:[#allocation6 + $0x60] sm:$0xff]
      %v80 = vld [vmem:[#allocation6 + $0x68] sm:$0xff]
      %v81 = vld [vmem:[#allocation6 + $0x70] sm:$0xff]
      %v82 = vld [vmem:[#allocation6 + $0x78] sm:$0xff]
      %v83 = vld [vmem:[%s2] sm:$0x3]
      %v85 = vlaneseq
      %v86 = vshrl.u32 %v85, 7
      %v87 = vsub.s32 0, %v86
      %v88 = vrot.slane %v83, %v87
      %v89 = vlaneseq
      %v90 = vshrl.u32 %v89, 7
      %v91 = vsub.s32 1, %v90
      %v92 = vrot.slane %v83, %v91
      %v97 = vunpack.c.l.b16 %v65
      %v98 = vunpack.c.l.b16 %v66
      %v99 = vpack.c.b16 %v98, %v97
      %v117 = vunpack.c.l.b16 %v67
      %v118 = vunpack.c.h.b16 %v67
      %v119 = vunpack.c.l.b16 %v68
      %v120 = vunpack.c.h.b16 %v68
      %v121 = vunpack.c.l.b16 %v69
      %v122 = vunpack.c.h.b16 %v69
      %v123 = vunpack.c.l.b16 %v70
      %v124 = vunpack.c.h.b16 %v70
      %v125 = vunpack.c.l.b16 %v71
      %v126 = vunpack.c.h.b16 %v71
      %v127 = vunpack.c.l.b16 %v72
      %v128 = vunpack.c.h.b16 %v72
      %v129 = vunpack.c.l.b16 %v73
      %v130 = vunpack.c.h.b16 %v73
      %v131 = vunpack.c.l.b16 %v74
      %v132 = vunpack.c.h.b16 %v74
      %v133 = vunpack.c.l.b16 %v75
      %v134 = vunpack.c.h.b16 %v75
      %v135 = vunpack.c.l.b16 %v76
      %v136 = vunpack.c.h.b16 %v76
      %v137 = vunpack.c.l.b16 %v77
      %v138 = vunpack.c.h.b16 %v77
      %v139 = vunpack.c.l.b16 %v78
      %v140 = vunpack.c.h.b16 %v78
      %v141 = vunpack.c.l.b16 %v79
      %v142 = vunpack.c.h.b16 %v79
      %v143 = vunpack.c.l.b16 %v80
      %v144 = vunpack.c.h.b16 %v80
      %v145 = vunpack.c.l.b16 %v81
      %v146 = vunpack.c.h.b16 %v81
      %v147 = vunpack.c.l.b16 %v82
      %v148 = vunpack.c.h.b16 %v82
      %v149 = vpack.c.b16 %v119, %v117
      %v150 = vpack.c.b16 %v120, %v118
      %v151 = vpack.c.b16 %v123, %v121
      %v152 = vpack.c.b16 %v124, %v122
      %v153 = vpack.c.b16 %v127, %v125
      %v154 = vpack.c.b16 %v128, %v126
      %v155 = vpack.c.b16 %v131, %v129
      %v156 = vpack.c.b16 %v132, %v130
      %v157 = vpack.c.b16 %v135, %v133
      %v158 = vpack.c.b16 %v136, %v134
      %v159 = vpack.c.b16 %v139, %v137
      %v160 = vpack.c.b16 %v140, %v138
      %v161 = vpack.c.b16 %v143, %v141
      %v162 = vpack.c.b16 %v144, %v142
      %v163 = vpack.c.b16 %v147, %v145
      %v164 = vpack.c.b16 %v148, %v146
      %181 = vmatprep.subr.bf16.mxu0 %v150
      %182 = vmatpush1.bf16.msra.mxu0 %v149
      %183 = vmatprep.subr.bf16.mxu0 %v152
      %184 = vmatpush1.bf16.msra.mxu0 %v151
      %185 = vmatprep.subr.bf16.mxu0 %v154
      %186 = vmatpush1.bf16.msra.mxu0 %v153
      %187 = vmatprep.subr.bf16.mxu0 %v156
      %188 = vmatpush1.bf16.msra.mxu0 %v155
      %189 = vmatprep.subr.bf16.mxu0 %v158
      %190 = vmatpush1.bf16.msra.mxu0 %v157
      %191 = vmatprep.subr.bf16.mxu0 %v160
      %192 = vmatpush1.bf16.msra.mxu0 %v159
      %193 = vmatprep.subr.bf16.mxu0 %v162
      %194 = vmatpush1.bf16.msra.mxu0 %v161
      %195 = vmatprep.subr.bf16.mxu0 %v164
      %196 = vmatpush1.bf16.msra.mxu0 %v163
      %197 = vmatprep.subr.bf16.mxu0 0
      %198 = vmatpush1.bf16.msra.mxu0 0
      %199 = vmatprep.subr.bf16.mxu0 0
      %200 = vmatpush1.bf16.msra.mxu0 0
      %201 = vmatprep.subr.bf16.mxu0 0
      %202 = vmatpush1.bf16.msra.mxu0 0
      %203 = vmatprep.subr.bf16.mxu0 0
      %204 = vmatpush1.bf16.msra.mxu0 0
      %205 = vmatprep.subr.bf16.mxu0 0
      %206 = vmatpush1.bf16.msra.mxu0 0
      %207 = vmatprep.subr.bf16.mxu0 0
      %208 = vmatpush1.bf16.msra.mxu0 0
      %209 = vmatprep.subr.bf16.mxu0 0
      %210 = vmatpush1.bf16.msra.mxu0 0
      %211 = vmatprep.subr.bf16.mxu0 0
      %212 = vmatpush1.bf16.msra.mxu0 0
      %213 = vmatprep.mubr.bf16.mxu0 0
      %214 = vmatmul.mubr.bf16.gmra.mrb[0].mxu0 %v99
      %v215 = vpop.f32.mrb[0].mxu0
      %v216 = vadd.f32 %v88, %v215
      %v217 = vpop.f32.mrb[0].mxu0
      %v218 = vadd.f32 %v92, %v217
      %v219 = vpop.f32.mrb[0].mxu0
      %v220 = vadd.f32 %v88, %v219
      %v221 = vpop.f32.mrb[0].mxu0
      %v222 = vadd.f32 %v92, %v221
      %223 = vdwg.mxu0
      %v224 = vtanh.pop %v216
      %v225 = vtanh.pop %v220
      %v226 = vxor.u32 %v218, 2147483648
      %v227 = vxor.u32 %v222, 2147483648
      %v228 = vmul.f32 %v226, 1.442695
      %v229 = vpow.pop %v228
      %v230 = vmul.f32 %v227, 1.442695
      %v231 = vpow.pop %v230
      %v232 = vadd.f32 %v229, 1.0
      %v233 = vadd.f32 %v231, 1.0
      %v234 = vrcp.pop %v232
      %v235 = vmul.f32 1.0, %v234
      %v236 = vrcp.pop %v233
      %v237 = vmul.f32 1.0, %v236
      %v238 = vmul.f32 %v224, %v235
      %v239 = vmul.f32 %v225, %v237
      %v240 = vpack.c.bf16 %v239, %v238
      %241 = vst [vmem:[#allocation2] sm:$0xff] %v240
    $region33: #{tpu_custom_call.1} parent=1 // pred_fallthru
      _
    %v242 = vld [vmem:[#allocation2] sm:$0xff]
    %v243 = vld [vmem:[#allocation8] sm:$0xf]
    %v244 = vld [vmem:[#allocation8 + $0x4] sm:$0xf]
    %v245 = vld [vmem:[#allocation8 + $0x8] sm:$0xf]
    %v246 = vld [vmem:[#allocation8 + $0xc] sm:$0xf]
    %v247 = vld [vmem:[#allocation8 + $0x10] sm:$0xf]
    %v248 = vld [vmem:[#allocation8 + $0x14] sm:$0xf]
    %v249 = vld [vmem:[#allocation8 + $0x18] sm:$0xf]
    %v250 = vld [vmem:[#allocation8 + $0x1c] sm:$0xf]
    %v251 = vld [vmem:[#allocation8 + $0x20] sm:$0xf]
    %v252 = vld [vmem:[#allocation8 + $0x24] sm:$0xf]
    %v253 = vld [vmem:[#allocation8 + $0x28] sm:$0xf]
    %v254 = vld [vmem:[#allocation8 + $0x2c] sm:$0xf]
    %v255 = vld [vmem:[#allocation8 + $0x30] sm:$0xf]
    %v256 = vld [vmem:[#allocation8 + $0x34] sm:$0xf]
    %v257 = vld [vmem:[#allocation8 + $0x38] sm:$0xf]
    %v258 = vld [vmem:[#allocation8 + $0x3c] sm:$0xf]
    %v275 = vunpack.c.l.b16 %v243
    %v276 = vunpack.c.l.b16 %v244
    %v277 = vunpack.c.l.b16 %v245
    %v278 = vunpack.c.l.b16 %v246
    %v279 = vunpack.c.l.b16 %v247
    %v280 = vunpack.c.l.b16 %v248
    %v281 = vunpack.c.l.b16 %v249
    %v282 = vunpack.c.l.b16 %v250
    %v283 = vunpack.c.l.b16 %v251
    %v284 = vunpack.c.l.b16 %v252
    %v285 = vunpack.c.l.b16 %v253
    %v286 = vunpack.c.l.b16 %v254
    %v287 = vunpack.c.l.b16 %v255
    %v288 = vunpack.c.l.b16 %v256
    %v289 = vunpack.c.l.b16 %v257
    %v290 = vunpack.c.l.b16 %v258
    %v291 = vpack.c.b16 %v276, %v275
    %v292 = vpack.c.b16 %v278, %v277
    %v293 = vpack.c.b16 %v280, %v279
    %v294 = vpack.c.b16 %v282, %v281
    %v295 = vpack.c.b16 %v284, %v283
    %v296 = vpack.c.b16 %v286, %v285
    %v297 = vpack.c.b16 %v288, %v287
    %v298 = vpack.c.b16 %v290, %v289
    %307 = vmatprep.subr.bf16.mxu0 0
    %308 = vmatpush1.bf16.msra.mxu0 %v291
    %309 = vmatprep.subr.bf16.mxu0 0
    %310 = vmatpush1.bf16.msra.mxu0 %v292
    %311 = vmatprep.subr.bf16.mxu0 0
    %312 = vmatpush1.bf16.msra.mxu0 %v293
    %313 = vmatprep.subr.bf16.mxu0 0
    %314 = vmatpush1.bf16.msra.mxu0 %v294
    %315 = vmatprep.subr.bf16.mxu0 0
    %316 = vmatpush1.bf16.msra.mxu0 %v295
    %317 = vmatprep.subr.bf16.mxu0 0
    %318 = vmatpush1.bf16.msra.mxu0 %v296
    %319 = vmatprep.subr.bf16.mxu0 0
    %320 = vmatpush1.bf16.msra.mxu0 %v297
    %321 = vmatprep.subr.bf16.mxu0 0
    %322 = vmatpush1.bf16.msra.mxu0 %v298
    %323 = vmatprep.subr.bf16.mxu0 0
    %324 = vmatpush1.bf16.msra.mxu0 0
    %325 = vmatprep.subr.bf16.mxu0 0
    %326 = vmatpush1.bf16.msra.mxu0 0
    %327 = vmatprep.subr.bf16.mxu0 0
    %328 = vmatpush1.bf16.msra.mxu0 0
    %329 = vmatprep.subr.bf16.mxu0 0
    %330 = vmatpush1.bf16.msra.mxu0 0
    %331 = vmatprep.subr.bf16.mxu0 0
    %332 = vmatpush1.bf16.msra.mxu0 0
    %333 = vmatprep.subr.bf16.mxu0 0
    %334 = vmatpush1.bf16.msra.mxu0 0
    %335 = vmatprep.subr.bf16.mxu0 0
    %336 = vmatpush1.bf16.msra.mxu0 0
    %337 = vmatprep.subr.bf16.mxu0 0
    %338 = vmatpush1.bf16.msra.mxu0 0
    %339 = vmatprep.mubr.bf16.mxu0 0
    %340 = vmatmul.mubr.bf16.gmra.mrb[0].mxu0 %v242
    %v341 = vpop.f32.mrb[0].mxu0
    %v342 = vadd.f32 0.0, %v341
    %v343 = vpop.f32.mrb[0].mxu0
    %v344 = vpop.f32.mrb[0].mxu0
    %v345 = vadd.f32 0.0, %v344
    %v346 = vpop.f32.mrb[0].mxu0
    %347 = vdwg.mxu0
    %v348 = vpack.c.bf16 %v345, %v342
    %v349 = vxor.u32 %v348, 2147516416
    %v351 = vmul.bf16 %v349, 1069105081
    %v352 = vpow.bf16.pop %v351
    %v353 = vadd.bf16 %v352, 1065369472
    %v354 = vrcp.bf16.pop %v353
    %v355 = vmul.bf16 1065369472, %v354
    %v356 = vunpack.c.l.bf16 %v355
    %v357 = vunpack.c.h.bf16 %v355
    %358 = vst [vmem:[#allocation9] sm:$0xff] %v356
    %359 = vst [vmem:[#allocation9 + $0x8] sm:$0xff] %v357
    // Predicated region
    $region34: #{tpu_custom_call.1} parent=1 // pred_check
      _
    $region35: #{tpu_custom_call.1} parent=1 // pred_check_branch
      %361 = sbr.rel (0) target = $region37
    $region36: #{tpu_custom_call.1} parent=1 // pred_region
      %s363 = ssub.s32 256, 256
      %364 = vsyncadd [#allocation5], %s363
      %s365 = sshll.u32 [#allocation9], 4
      %s366 = int_to_ptr.vmem [resolvable:$true] %s365
      %371 = dma.vmem_to_hbm [thread:$0]  %s366, 256, %s4, [#allocation5], 128, 128, 8
    $region37: #{tpu_custom_call.1} parent=1 // pred_fallthru
      _
    // Predicated region
    $region38: #{tpu_custom_call.1} parent=1 // pred_check
      _
    $region39: #{tpu_custom_call.1} parent=1 // pred_check_branch
      %373 = sbr.rel (0) target = $region41
    $region40: #{tpu_custom_call.1} parent=1 // pred_region
      %374 = dma.done [#allocation5], 256
    $region41: #{tpu_custom_call.1} parent=1 // pred_fallthru
      _
    %375 = vsyncpa [#allocation4], 1
    %376 = vsyncpa [#allocation7], 1
    %377 = vsyncpa [#allocation5], 1

</llo_original>
